<compile_context>
chip_gen: v6e
topology: v6e:2x2x1
jax: 0.10.0
libtpu: 0.0.40
codegen_flags: <defaults>
</compile_context>

<pallas_src>
import functools

import jax
import jax.numpy as jnp
from jax import lax
from jax.experimental import pallas as pl
from jax.experimental.pallas import tpu as pltpu

F32 = jnp.float32


# =============================================================================
# Fused GlobLN + PReLU kernel
# =============================================================================

def _norm_act_kernel(x_ref, g_ref, b_ref, a_ref, o_ref, *, eps):
    """One batch element: x (C, T), gamma/beta (C, 1), alpha (1, 1) -> (C, T)."""
    x = x_ref[...]                                   # (C, T) in VMEM
    # GlobLN: mean / var over ALL non-batch dims (channels and time).
    mean = jnp.mean(x)
    var = jnp.mean((x - mean) ** 2)
    inv_std = lax.rsqrt(var + eps)
    normed = (x - mean) * inv_std
    # apply_gain_and_bias: per-channel gamma/beta (broadcast over time lanes).
    y = normed * g_ref[...] + b_ref[...]
    # PReLU with a single learnable slope (nn.PReLU() default).
    alpha = a_ref[0, 0]
    o_ref[...] = jnp.where(y >= 0, y, y * alpha)


def norm_act(x, gamma, beta, alpha, *, eps=1e-8):
    """NormAct forward.

    x: (B, C, *) tensor (any trailing shape, like the PyTorch GlobLN),
    gamma/beta: (C,) per-channel gain/bias, alpha: scalar PReLU slope.
    Returns tensor with the same shape as x (float32).
    """
    orig_shape = x.shape
    B, C = orig_shape[0], orig_shape[1]
    x2 = x.reshape(B, C, -1).astype(F32)             # time-major last axis -> 128 lanes
    T = x2.shape[-1]

    g = gamma.reshape(C, 1).astype(F32)
    b = beta.reshape(C, 1).astype(F32)
    a = jnp.reshape(jnp.asarray(alpha, F32), (1, 1))

    out = pl.pallas_call(
        functools.partial(_norm_act_kernel, eps=eps),
        out_shape=jax.ShapeDtypeStruct((B, C, T), F32),
        grid=(B,),
        in_specs=[
            pl.BlockSpec((None, C, T), lambda i: (i, 0, 0)),   # per-batch (C, T) tile
            pl.BlockSpec((C, 1), lambda i: (0, 0)),            # gamma
            pl.BlockSpec((C, 1), lambda i: (0, 0)),            # beta
            pl.BlockSpec((1, 1), lambda i: (0, 0)),            # alpha (scalar)
        ],
        out_specs=pl.BlockSpec((None, C, T), lambda i: (i, 0, 0)),
        compiler_params=pltpu.CompilerParams(
            dimension_semantics=("parallel",),                 # shard batch on v7x 2-TC
        ),
    )(x2, g, b, a)
    return out.reshape(orig_shape)


# =============================================================================
# Pure-JAX reference (mirrors the PyTorch module) for validation
# =============================================================================

def norm_act_ref(x, gamma, beta, alpha, *, eps=1e-8):
    x = x.astype(F32)
    dims = tuple(range(1, x.ndim))
    mean = jnp.mean(x, axis=dims, keepdims=True)
    var = jnp.mean((x - mean) ** 2, axis=dims, keepdims=True)
    normed = (x - mean) / jnp.sqrt(var + eps)
    bshape = (1, x.shape[1]) + (1,) * (x.ndim - 2)
    y = gamma.astype(F32).reshape(bshape) * normed + beta.astype(F32).reshape(bshape)
    return jnp.where(y >= 0, y, y * jnp.asarray(alpha, F32))


# =============================================================================
# Main
# =============================================================================

if __name__ == "__main__":
    key = jax.random.PRNGKey(0)
    kx, = jax.random.split(key, 1)

    # Small but lane-friendly demo shapes: B=2, C=32 channels, T=256 time steps.
    B, C, T = 2, 32, 256
    x = jax.random.normal(kx, (B, C, T), F32)

    # NormAct parameters at PyTorch init values.
    gamma = jnp.ones((C,), F32)       # GlobLN gamma
    beta = jnp.zeros((C,), F32)       # GlobLN beta
    alpha = jnp.asarray(0.25, F32)    # nn.PReLU() single-parameter init

    fwd = jax.jit(norm_act)
    out = fwd(x, gamma, beta, alpha)
    out = jax.block_until_ready(out)

    ref = norm_act_ref(x, gamma, beta, alpha)

    assert out.shape == x.shape, (out.shape, x.shape)
    assert bool(jnp.all(jnp.isfinite(out)))
    assert bool(jnp.allclose(out, ref, rtol=1e-5, atol=1e-5)), float(
        jnp.max(jnp.abs(out - ref)))

    print("KERNEL_OK")
</pallas_src>

<mosaic_0001>
module attributes {stable_mosaic.version = 11 : i64} {
  func.func @_norm_act_kernel(%arg0: i32, %arg1: memref<1x32x256xf32, #tpu.memory_space<vmem>>, %arg2: memref<32x1xf32, #tpu.memory_space<vmem>>, %arg3: memref<32x1xf32, #tpu.memory_space<vmem>>, %arg4: memref<1x1xf32, #tpu.memory_space<vmem>>, %arg5: memref<1x32x256xf32, #tpu.memory_space<vmem>>) attributes {dimension_semantics = [#tpu.dimension_semantics<parallel>], iteration_bounds = array<i64: 2>, scalar_prefetch = 0 : i64, scratch_operands = 0 : i64, tpu.core_type = #tpu.core_type<tc>, window_params = [{transform_indices = @transform_0, window_bounds = array<i64: 1, 32, 256>}, {pipeline_mode = #tpu.pipeline_mode<synchronous>, transform_indices = @transform_1, window_bounds = array<i64: 32, 1>}, {pipeline_mode = #tpu.pipeline_mode<synchronous>, transform_indices = @transform_2, window_bounds = array<i64: 32, 1>}, {pipeline_mode = #tpu.pipeline_mode<synchronous>, transform_indices = @transform_3, window_bounds = array<i64: 1, 1>}, {transform_indices = @transform_4, window_bounds = array<i64: 1, 32, 256>}]} {
    %c0 = arith.constant 0 : index
    %c0_0 = arith.constant 0 : index
    %c0_1 = arith.constant 0 : index
    %0 = vector.load %arg1[%c0, %c0_0, %c0_1] : memref<1x32x256xf32, #tpu.memory_space<vmem>>, vector<1x32x256xf32>
    %1 = vector.shape_cast %0 : vector<1x32x256xf32> to vector<32x256xf32>
    %2 = vector.shape_cast %1 : vector<32x256xf32> to vector<1x32x256xf32>
    %cst = arith.constant dense<0.000000e+00> : vector<1xf32>
    %3 = vector.multi_reduction <add>, %2, %cst [1, 2] : vector<1x32x256xf32> to vector<1xf32>
    %4 = vector.shape_cast %3 : vector<1xf32> to vector<1x1x1xf32>
    %5 = vector.extract %4[0, 0, 0] : f32 from vector<1x1x1xf32>
    %cst_2 = arith.constant 8.192000e+03 : f32
    %6 = arith.divf %5, %cst_2 : f32
    %7 = vector.broadcast %6 : f32 to vector<32x256xf32>
    %8 = arith.subf %1, %7 : vector<32x256xf32>
    %9 = arith.mulf %8, %8 : vector<32x256xf32>
    %10 = vector.shape_cast %9 : vector<32x256xf32> to vector<1x32x256xf32>
    %cst_3 = arith.constant dense<0.000000e+00> : vector<1xf32>
    %11 = vector.multi_reduction <add>, %10, %cst_3 [1, 2] : vector<1x32x256xf32> to vector<1xf32>
    %12 = vector.shape_cast %11 : vector<1xf32> to vector<1x1x1xf32>
    %13 = vector.extract %12[0, 0, 0] : f32 from vector<1x1x1xf32>
    %cst_4 = arith.constant 8.192000e+03 : f32
    %14 = arith.divf %13, %cst_4 : f32
    %cst_5 = arith.constant 9.99999993E-9 : f32
    %15 = arith.addf %14, %cst_5 : f32
    %16 = math.rsqrt %15 : f32
    %17 = vector.broadcast %6 : f32 to vector<32x256xf32>
    %18 = arith.subf %1, %17 : vector<32x256xf32>
    %19 = vector.broadcast %16 : f32 to vector<32x256xf32>
    %20 = arith.mulf %18, %19 : vector<32x256xf32>
    %c0_6 = arith.constant 0 : index
    %c0_7 = arith.constant 0 : index
    %21 = vector.load %arg2[%c0_6, %c0_7] : memref<32x1xf32, #tpu.memory_space<vmem>>, vector<32x1xf32>
    %22 = vector.broadcast %21 : vector<32x1xf32> to vector<32x256xf32>
    %23 = arith.mulf %20, %22 : vector<32x256xf32>
    %c0_8 = arith.constant 0 : index
    %c0_9 = arith.constant 0 : index
    %24 = vector.load %arg3[%c0_8, %c0_9] : memref<32x1xf32, #tpu.memory_space<vmem>>, vector<32x1xf32>
    %25 = vector.broadcast %24 : vector<32x1xf32> to vector<32x256xf32>
    %26 = arith.addf %23, %25 : vector<32x256xf32>
    %c0_10 = arith.constant 0 : index
    %c0_11 = arith.constant 0 : index
    %27 = vector.load %arg4[%c0_10, %c0_11] : memref<1x1xf32, #tpu.memory_space<vmem>>, vector<1x1xf32>
    %28 = vector.extract %27[0, 0] : f32 from vector<1x1xf32>
    %cst_12 = arith.constant 0.000000e+00 : f32
    %29 = vector.broadcast %cst_12 : f32 to vector<32x256xf32>
    %30 = arith.cmpf oge, %26, %29 : vector<32x256xf32>
    %31 = vector.broadcast %28 : f32 to vector<32x256xf32>
    %32 = arith.mulf %26, %31 : vector<32x256xf32>
    %33 = arith.select %30, %26, %32 : vector<32x256xi1>, vector<32x256xf32>
    %c0_13 = arith.constant 0 : index
    %c0_14 = arith.constant 0 : index
    %c0_15 = arith.constant 0 : index
    %34 = vector.load %arg5[%c0_13, %c0_14, %c0_15] : memref<1x32x256xf32, #tpu.memory_space<vmem>>, vector<1x32x256xf32>
    %35 = vector.shape_cast %34 : vector<1x32x256xf32> to vector<32x256xf32>
    %36 = vector.shape_cast %33 : vector<32x256xf32> to vector<1x32x256xf32>
    tpu.vector_store %arg5[%c0_13, %c0_14, %c0_15], %36 {strides = array<i32>} : memref<1x32x256xf32, #tpu.memory_space<vmem>>, vector<1x32x256xf32>,
    return
  }
  func.func @transform_0(%arg0: i32) -> (i32, i32, i32) {
    %c0_i32 = arith.constant 0 : i32
    %c0_i32_0 = arith.constant 0 : i32
    %c0_i32_1 = arith.constant 0 : i32
    return %arg0, %c0_i32, %c0_i32_0 : i32, i32, i32
  }
  func.func @transform_1(%arg0: i32) -> (i32, i32) {
    %c0_i32 = arith.constant 0 : i32
    %c0_i32_0 = arith.constant 0 : i32
    %c0_i32_1 = arith.constant 0 : i32
    return %c0_i32, %c0_i32_0 : i32, i32
  }
  func.func @transform_2(%arg0: i32) -> (i32, i32) {
    %c0_i32 = arith.constant 0 : i32
    %c0_i32_0 = arith.constant 0 : i32
    %c0_i32_1 = arith.constant 0 : i32
    return %c0_i32, %c0_i32_0 : i32, i32
  }
  func.func @transform_3(%arg0: i32) -> (i32, i32) {
    %c0_i32 = arith.constant 0 : i32
    %c0_i32_0 = arith.constant 0 : i32
    %c0_i32_1 = arith.constant 0 : i32
    return %c0_i32, %c0_i32_0 : i32, i32
  }
  func.func @transform_4(%arg0: i32) -> (i32, i32, i32) {
    %c0_i32 = arith.constant 0 : i32
    %c0_i32_0 = arith.constant 0 : i32
    %c0_i32_1 = arith.constant 0 : i32
    return %arg0, %c0_i32, %c0_i32_0 : i32, i32, i32
  }
}

</mosaic_0001>

<llo_original>
// kernel: norm_act.1
$region0: #{norm_act.1}
  #allocation0 [shape = 'u32[]', space=smem, size = 0x4, offset = 0x4, fixed_abs, tag = 'smem constant byte address 0x4 - core index']
  #allocation1 [shape = 'u32[144,128]{1,0:T(1,128)}', space=vmem, size = 0x12000, scoped, tag = 'internal scratch']
  #allocation2 [shape = 'f32[1,1]{1,0:T(1,128)S(1)}', space=vmem, size = 0x200, scoped, tag = 'scoped memory for norm_act.1']
  %s0 = inlined_call_operand.hbm [shape: f32[2,32,256], index: 0, kind: input, shape index: {}]
  %s1 = inlined_call_operand.vmem [shape: f32[32,1], index: 1, kind: input, shape index: {}]
  %s2 = inlined_call_operand.vmem [shape: f32[32,1], index: 2, kind: input, shape index: {}]
  %s3 = inlined_call_operand.<no memory space> [shape: f32[1,1], index: 3, kind: input, shape index: {}]
  %s4 = inlined_call_operand.hbm [shape: f32[2,32,256], index: 4, kind: output, shape index: {}]
  %s5 = sld [smem:[#allocation0]]
  $region53: #{norm_act.1} parent=0
    _
  %s7 = ssub.s32 1, %s5
  %s8 = scalar_select 0, %s7, %s5
  %v9 = vstv %s3
  %10 = vst [vmem:[#allocation2] sm:$0x1] %v9
  $region1: #{norm_act.1} parent=0
    #allocation3 [shape = 'u8[65536]{0}', space=vmem, size = 0x10000, scoped, tag = 'input window, operand 0']
    #allocation4 [shape = 's32[2]{0}', space=sflag, size = 0x8, scoped, tag = 'scoped memory for norm_act.1']
    #allocation5 [shape = 's32[2]{0}', space=sflag, size = 0x8, scoped, tag = 'scoped memory for norm_act.1']
    #allocation6 [shape = 'u8[65536]{0}', space=vmem, size = 0x10000, scoped, tag = 'output window, operand 0']
    %11 = vsyncpa [#allocation4], 0
    %s12 = scalar_lea.sflag [#allocation4], 1
    %13 = vsyncpa %s12, 0
    %14 = vsyncpa [#allocation5], 0
    %s15 = scalar_lea.sflag [#allocation5], 1
    %16 = vsyncpa %s15, 0
    loop: start=0, step=1, limit=4
    $region2: #{norm_act.1} parent=1 // loop_pre_header
      _
    $region3: #{norm_act.1} parent=1 // loop_header
      %s18 = sphi 0, %s22
      %p19 = scmp.ge.s32.totalorder %s18, 4
      %s28 = sphi 0, %s30
      %s31 = sphi 0, %s28
      %s32 = sphi 0, %s31
      %s48 = sphi 0, %s32
      %s52 = sphi 0, %s52
      %s54 = sphi 0, %s52
      %s55 = sphi 0, %s54
      %s69 = sphi 0, %s55
      %s73 = sphi 0, %s73
      %s75 = sphi 0, %s73
      %s76 = sphi 0, %s75
      %s90 = sphi 0, %s76
      %s94 = sphi 0, %s94
      %s96 = sphi 0, %s94
      %s97 = sphi 0, %s96
      %s111 = sphi 0, %s97
      %s117 = sphi 0, %s119
      %s120 = sphi 0, %s117
      %s121 = sphi 0, %s120
      %s137 = sphi 0, %s121
    $region4: #{norm_act.1} parent=1 // loop_header_branch
      %21 = sbr.rel (%p19) target = $region8
    $region5: #{norm_act.1} parent=1 // loop_body
      %s23 = ssub.s32 %s18, 1
      %s24 = ssub.s32 %s18, 2
      %s25 = sadd.s32 %s18, 1
      %s26 = ssub.s32 %s18, %s25
      %p27 = scmp.eq.s32.totalorder %s26, 0
      %s29 = sadd.s32 %s28, 1
      %s30 = scalar_select %p27, %s28, %s29
      %p33 = pneg %p27
      %p34 = scmp.eq.s32.totalorder %s18, 1
      %p35 = por %p33, %p34
      %p36 = scmp.ne.s32.totalorder %s28, %s31
      %p37 = scmp.eq.s32.totalorder %s18, 0
      %p38 = por %p36, %p37
      %p39 = scmp.ne.s32.totalorder %s28, %s31
      %p40 = scmp.eq.s32.totalorder %s23, 1
      %p41 = por %p39, %p40
      %p42 = scmp.ne.s32.totalorder %s31, %s32
      %p43 = scmp.eq.s32.totalorder %s23, 0
      %p44 = por %p42, %p43
      %p45 = scmp.ne.s32.totalorder %s31, %s32
      %p46 = scmp.eq.s32.totalorder %s24, 1
      %p47 = por %p45, %p46
      %p49 = scmp.ne.s32.totalorder %s32, %s48
      %p50 = scmp.eq.s32.totalorder %s24, 0
      %p51 = por %p49, %p50
      %s53 = sadd.s32 %s52, 1
      %p56 = scmp.eq.s32.totalorder %s18, 1
      %p57 = scmp.ne.s32.totalorder %s52, %s54
      %p58 = scmp.eq.s32.totalorder %s18, 0
      %p59 = por %p57, %p58
      %p60 = scmp.ne.s32.totalorder %s52, %s54
      %p61 = scmp.eq.s32.totalorder %s23, 1
      %p62 = por %p60, %p61
      %p63 = scmp.ne.s32.totalorder %s54, %s55
      %p64 = scmp.eq.s32.totalorder %s23, 0
      %p65 = por %p63, %p64
      %p66 = scmp.ne.s32.totalorder %s54, %s55
      %p67 = scmp.eq.s32.totalorder %s24, 1
      %p68 = por %p66, %p67
      %p70 = scmp.ne.s32.totalorder %s55, %s69
      %p71 = scmp.eq.s32.totalorder %s24, 0
      %p72 = por %p70, %p71
      %s74 = sadd.s32 %s73, 1
      %p77 = scmp.eq.s32.totalorder %s18, 1
      %p78 = scmp.ne.s32.totalorder %s73, %s75
      %p79 = scmp.eq.s32.totalorder %s18, 0
      %p80 = por %p78, %p79
      %p81 = scmp.ne.s32.totalorder %s73, %s75
      %p82 = scmp.eq.s32.totalorder %s23, 1
      %p83 = por %p81, %p82
      %p84 = scmp.ne.s32.totalorder %s75, %s76
      %p85 = scmp.eq.s32.totalorder %s23, 0
      %p86 = por %p84, %p85
      %p87 = scmp.ne.s32.totalorder %s75, %s76
      %p88 = scmp.eq.s32.totalorder %s24, 1
      %p89 = por %p87, %p88
      %p91 = scmp.ne.s32.totalorder %s76, %s90
      %p92 = scmp.eq.s32.totalorder %s24, 0
      %p93 = por %p91, %p92
      %s95 = sadd.s32 %s94, 1
      %p98 = scmp.eq.s32.totalorder %s18, 1
      %p99 = scmp.ne.s32.totalorder %s94, %s96
      %p100 = scmp.eq.s32.totalorder %s18, 0
      %p101 = por %p99, %p100
      %p102 = scmp.ne.s32.totalorder %s94, %s96
      %p103 = scmp.eq.s32.totalorder %s23, 1
      %p104 = por %p102, %p103
      %p105 = scmp.ne.s32.totalorder %s96, %s97
      %p106 = scmp.eq.s32.totalorder %s23, 0
      %p107 = por %p105, %p106
      %p108 = scmp.ne.s32.totalorder %s96, %s97
      %p109 = scmp.eq.s32.totalorder %s24, 1
      %p110 = por %p108, %p109
      %p112 = scmp.ne.s32.totalorder %s97, %s111
      %p113 = scmp.eq.s32.totalorder %s24, 0
      %p114 = por %p112, %p113
      %s115 = ssub.s32 %s18, %s25
      %p116 = scmp.eq.s32.totalorder %s115, 0
      %s118 = sadd.s32 %s117, 1
      %s119 = scalar_select %p116, %s117, %s118
      %p122 = pneg %p116
      %p123 = scmp.eq.s32.totalorder %s18, 1
      %p124 = por %p122, %p123
      %p125 = scmp.ne.s32.totalorder %s117, %s120
      %p126 = scmp.eq.s32.totalorder %s18, 0
      %p127 = por %p125, %p126
      %p128 = scmp.ne.s32.totalorder %s117, %s120
      %p129 = scmp.eq.s32.totalorder %s23, 1
      %p130 = por %p128, %p129
      %p131 = scmp.ne.s32.totalorder %s120, %s121
      %p132 = scmp.eq.s32.totalorder %s23, 0
      %p133 = por %p131, %p132
      %p134 = scmp.ne.s32.totalorder %s120, %s121
      %p135 = scmp.eq.s32.totalorder %s24, 1
      %p136 = por %p134, %p135
      %p138 = scmp.ne.s32.totalorder %s121, %s137
      %p139 = scmp.eq.s32.totalorder %s24, 0
      %p140 = por %p138, %p139
      %p141 = scmp.le.s32.totalorder 1, %s18
      %p142 = scmp.lt.s32.totalorder %s18, 3
      %p143 = pnand %p141, %p142
      %p144 = pneg %p143
      // Predicated region
      $region9: #{norm_act.1} parent=5 // pred_check
        _
      $region10: #{norm_act.1} parent=5 // pred_check_branch
        %146 = sbr.rel (%p143) target = $region12
      $region11: #{norm_act.1} parent=5 // pred_region
        %s147 = ssub.s32 %s18, 1
        // Predicated region
        $region13: #{norm_act.1} parent=11 // pred_check
          %p148 = pneg %p65
        $region14: #{norm_act.1} parent=11 // pred_check_branch
          %150 = sbr.rel (%p148) target = $region16
        $region15: #{norm_act.1} parent=11 // pred_region
          _
        $region16: #{norm_act.1} parent=11 // pred_fallthru
          _
        // Predicated region
        $region17: #{norm_act.1} parent=11 // pred_check
          %p151 = pneg %p86
        $region18: #{norm_act.1} parent=11 // pred_check_branch
          %153 = sbr.rel (%p151) target = $region20
        $region19: #{norm_act.1} parent=11 // pred_region
          _
        $region20: #{norm_act.1} parent=11 // pred_fallthru
          _
        // Predicated region
        $region21: #{norm_act.1} parent=11 // pred_check
          %p154 = pneg %p107
        $region22: #{norm_act.1} parent=11 // pred_check_branch
          %156 = sbr.rel (%p154) target = $region24
        $region23: #{norm_act.1} parent=11 // pred_region
          _
        $region24: #{norm_act.1} parent=11 // pred_fallthru
          _
      $region12: #{norm_act.1} parent=5 // pred_fallthru
        _
      %p157 = scmp.lt.s32.totalorder %s18, 2
      // Predicated region
      $region25: #{norm_act.1} parent=5 // pred_check
        %p158 = pneg %p157
      $region26: #{norm_act.1} parent=5 // pred_check_branch
        %160 = sbr.rel (%p158) target = $region28
      $region27: #{norm_act.1} parent=5 // pred_region
        // Predicated region
        $region29: #{norm_act.1} parent=27 // pred_check
          %p161 = pneg %p38
        $region30: #{norm_act.1} parent=27 // pred_check_branch
          %163 = sbr.rel (%p161) target = $region32
        $region31: #{norm_act.1} parent=27 // pred_region
          %s164 = sand.u32 %s28, 1
          %s165 = scalar_lea.sflag [#allocation4], %s164
          %s166 = sand.u32 %s28, 1
          %s167 = smul.addr %s166, 64
          %s168 = scalar_lea.vmem [#allocation3], %s167
          %s170 = ssub.s32 1024, 1024
          %171 = vsyncadd %s165, %s170
          %s172 = smul.addr %s18, 8
          %s173 = smul.addr %s172, 128
          %s174 = scalar_lea.hbm %s0, %s173
          %s175 = sshll.u32 %s168, 4
          %s176 = int_to_ptr.vmem [resolvable:$true] %s175
          %181 = dma.hbm_to_vmem [thread:$0]  %s174, 1024, %s176, %s165, 256, 256, 16
        $region32: #{norm_act.1} parent=27 // pred_fallthru
          _
      $region28: #{norm_act.1} parent=5 // pred_fallthru
        _
      %p182 = scmp.le.s32.totalorder 1, %s18
      %p183 = scmp.lt.s32.totalorder %s18, 3
      %p184 = pnand %p182, %p183
      %p185 = pneg %p184
      // Predicated region
      $region33: #{norm_act.1} parent=5 // pred_check
        _
      $region34: #{norm_act.1} parent=5 // pred_check_branch
        %187 = sbr.rel (%p184) target = $region36
      $region35: #{norm_act.1} parent=5 // pred_region
        %s188 = ssub.s32 %s18, 1
        %s189 = sand.u32 %s31, 1
        %s190 = scalar_lea.sflag [#allocation4], %s189
        %s191 = sand.u32 %s31, 1
        %s192 = smul.addr %s191, 64
        %s193 = scalar_lea.vmem [#allocation3], %s192
        // Predicated region
        $region37: #{norm_act.1} parent=35 // pred_check
          %p194 = pneg %p44
        $region38: #{norm_act.1} parent=35 // pred_check_branch
          %196 = sbr.rel (%p194) target = $region40
        $region39: #{norm_act.1} parent=35 // pred_region
          %197 = dma.done %s190, 1024
        $region40: #{norm_act.1} parent=35 // pred_fallthru
          _
        %s198 = sand.u32 %s31, 1
        %s199 = scalar_lea.sflag [#allocation4], %s198
        %s200 = sand.u32 %s31, 1
        %s201 = smul.addr %s200, 64
        %s202 = scalar_lea.vmem [#allocation3], %s201
        %p203 = pneg %p44
        %p204 = pneg %p41
        %p205 = pneg %p65
        %p206 = pneg %p62
        %p207 = pneg %p86
        %p208 = pneg %p83
        %p209 = pneg %p107
        %p210 = pneg %p104
        %p211 = pneg %p133
        %p212 = pneg %p130
        %s213 = sand.u32 %s120, 1
        %s214 = scalar_lea.sflag [#allocation5], %s213
        %s215 = sand.u32 %s120, 1
        %s216 = smul.addr %s215, 64
        %s217 = scalar_lea.vmem [#allocation6], %s216
        %v218 = vld [vmem:[%s193] sm:$0xff]
        %v219 = vld [vmem:[%s193 + $0x8] sm:$0xff]
        %v220 = vld [vmem:[%s193 + $0x10] sm:$0xff]
        %v221 = vld [vmem:[%s193 + $0x18] sm:$0xff]
        %v222 = vld [vmem:[%s193 + $0x20] sm:$0xff]
        %v223 = vld [vmem:[%s193 + $0x28] sm:$0xff]
        %v224 = vld [vmem:[%s193 + $0x30] sm:$0xff]
        %v225 = vld [vmem:[%s193 + $0x38] sm:$0xff]
        %v226 = vadd.f32 %v218, %v219
        %v227 = vadd.f32 %v226, %v220
        %v228 = vadd.f32 %v227, %v221
        %v229 = vadd.f32 %v228, %v222
        %v230 = vadd.f32 %v229, %v223
        %v231 = vadd.f32 %v230, %v224
        %v232 = vadd.f32 %v231, %v225
        %233 = vadd.xlane.f32.xlu0 %v232
        %v234 = vpop.xlane.xlu0 %233
        %v235 = vrot.slane %v234, 4
        %v236 = vadd.f32 %v234, %v235
        %v237 = vrot.slane %v236, 2
        %v238 = vadd.f32 %v236, %v237
        %v239 = vrot.slane %v238, 1
        %v240 = vadd.f32 %v238, %v239
        %s241 = vtos %v240
        %v242 = vrcp.pop 8192.0
        %s243 = vtos %v242
        %s244 = smul.f32 %s241, %s243
        %v245 = vstv %s244
        %v246 = vsub.f32 %v218, %v245
        %v247 = vsub.f32 %v219, %v245
        %v248 = vsub.f32 %v220, %v245
        %v249 = vsub.f32 %v221, %v245
        %v250 = vsub.f32 %v222, %v245
        %v251 = vsub.f32 %v223, %v245
        %v252 = vsub.f32 %v224, %v245
        %v253 = vsub.f32 %v225, %v245
        %v254 = vmul.f32 %v246, %v246
        %v255 = vmul.f32 %v247, %v247
        %v256 = vmul.f32 %v248, %v248
        %v257 = vmul.f32 %v249, %v249
        %v258 = vmul.f32 %v250, %v250
        %v259 = vmul.f32 %v251, %v251
        %v260 = vmul.f32 %v252, %v252
        %v261 = vmul.f32 %v253, %v253
        %v262 = vadd.f32 %v254, %v255
        %v263 = vadd.f32 %v262, %v256
        %v264 = vadd.f32 %v263, %v257
        %v265 = vadd.f32 %v264, %v258
        %v266 = vadd.f32 %v265, %v259
        %v267 = vadd.f32 %v266, %v260
        %v268 = vadd.f32 %v267, %v261
        %269 = vadd.xlane.f32.xlu0 %v268
        %v270 = vpop.xlane.xlu0 %269
        %v271 = vrot.slane %v270, 4
        %v272 = vadd.f32 %v270, %v271
        %v273 = vrot.slane %v272, 2
        %v274 = vadd.f32 %v272, %v273
        %v275 = vrot.slane %v274, 1
        %v276 = vadd.f32 %v274, %v275
        %s277 = vtos %v276
        %v278 = vrcp.pop 8192.0
        %s279 = vtos %v278
        %s280 = smul.f32 %s277, %s279
        %s281 = sadd.f32 %s280, 1e-08
        %v282 = vstv %s281
        %v283 = vrsqrt.pop %v282
        %s284 = vtos %v283
        %v285 = vstv %s284
        %v286 = vmul.f32 %v246, %v285
        %v287 = vmul.f32 %v247, %v285
        %v288 = vmul.f32 %v248, %v285
        %v289 = vmul.f32 %v249, %v285
        %v290 = vmul.f32 %v250, %v285
        %v291 = vmul.f32 %v251, %v285
        %v292 = vmul.f32 %v252, %v285
        %v293 = vmul.f32 %v253, %v285
        %v294 = vld [vmem:[%s1] sm:$0xff]
        %v295 = vld [vmem:[%s1 + $0x8] sm:$0xff]
        %v296 = vld [vmem:[%s1 + $0x10] sm:$0xff]
        %v297 = vld [vmem:[%s1 + $0x18] sm:$0xff]
        %299 = vset.pattern.permute.xlu0 0
        %300 = vperm.xlu0 %299, %v294
        %v301 = vpop.permute.xlu0 %300
        %304 = vset.pattern.permute.xlu0 0
        %305 = vperm.xlu0 %304, %v295
        %v306 = vpop.permute.xlu0 %305
        %309 = vset.pattern.permute.xlu0 0
        %310 = vperm.xlu0 %309, %v296
        %v311 = vpop.permute.xlu0 %310
        %314 = vset.pattern.permute.xlu0 0
        %315 = vperm.xlu0 %314, %v297
        %v316 = vpop.permute.xlu0 %315
        %v318 = vmul.f32 %v286, %v301
        %v319 = vmul.f32 %v287, %v301
        %v320 = vmul.f32 %v288, %v306
        %v321 = vmul.f32 %v289, %v306
        %v322 = vmul.f32 %v290, %v311
        %v323 = vmul.f32 %v291, %v311
        %v324 = vmul.f32 %v292, %v316
        %v325 = vmul.f32 %v293, %v316
        %v326 = vld [vmem:[%s2] sm:$0xff]
        %v327 = vld [vmem:[%s2 + $0x8] sm:$0xff]
        %v328 = vld [vmem:[%s2 + $0x10] sm:$0xff]
        %v329 = vld [vmem:[%s2 + $0x18] sm:$0xff]
        %331 = vset.pattern.permute.xlu0 0
        %332 = vperm.xlu0 %331, %v326
        %v333 = vpop.permute.xlu0 %332
        %336 = vset.pattern.permute.xlu0 0
        %337 = vperm.xlu0 %336, %v327
        %v338 = vpop.permute.xlu0 %337
        %341 = vset.pattern.permute.xlu0 0
        %342 = vperm.xlu0 %341, %v328
        %v343 = vpop.permute.xlu0 %342
        %346 = vset.pattern.permute.xlu0 0
        %347 = vperm.xlu0 %346, %v329
        %v348 = vpop.permute.xlu0 %347
        %v350 = vadd.f32 %v318, %v333
        %v351 = vadd.f32 %v319, %v333
        %v352 = vadd.f32 %v320, %v338
        %v353 = vadd.f32 %v321, %v338
        %v354 = vadd.f32 %v322, %v343
        %v355 = vadd.f32 %v323, %v343
        %v356 = vadd.f32 %v324, %v348
        %v357 = vadd.f32 %v325, %v348
        %v358 = vld [vmem:[#allocation2] sm:$0x1]
        %s359 = vtos %v358
        %vm360 = vcmp.ge.f32.partialorder %v350, 0.0
        %vm361 = vcmp.ge.f32.partialorder %v351, 0.0
        %vm362 = vcmp.ge.f32.partialorder %v352, 0.0
        %vm363 = vcmp.ge.f32.partialorder %v353, 0.0
        %vm364 = vcmp.ge.f32.partialorder %v354, 0.0
        %vm365 = vcmp.ge.f32.partialorder %v355, 0.0
        %vm366 = vcmp.ge.f32.partialorder %v356, 0.0
        %vm367 = vcmp.ge.f32.partialorder %v357, 0.0
        %v368 = vstv %s359
        %v369 = vmul.f32 %v350, %v368
        %v370 = vmul.f32 %v351, %v368
        %v371 = vmul.f32 %v352, %v368
        %v372 = vmul.f32 %v353, %v368
        %v373 = vmul.f32 %v354, %v368
        %v374 = vmul.f32 %v355, %v368
        %v375 = vmul.f32 %v356, %v368
        %v376 = vmul.f32 %v357, %v368
        %v377 = vsel %vm360, %v350, %v369
        %v378 = vsel %vm361, %v351, %v370
        %v379 = vsel %vm362, %v352, %v371
        %v380 = vsel %vm363, %v353, %v372
        %v381 = vsel %vm364, %v354, %v373
        %v382 = vsel %vm365, %v355, %v374
        %v383 = vsel %vm366, %v356, %v375
        %v384 = vsel %vm367, %v357, %v376
        %385 = vst [vmem:[%s217] sm:$0xff] %v377
        %386 = vst [vmem:[%s217 + $0x8] sm:$0xff] %v378
        %387 = vst [vmem:[%s217 + $0x10] sm:$0xff] %v379
        %388 = vst [vmem:[%s217 + $0x18] sm:$0xff] %v380
        %389 = vst [vmem:[%s217 + $0x20] sm:$0xff] %v381
        %390 = vst [vmem:[%s217 + $0x28] sm:$0xff] %v382
        %391 = vst [vmem:[%s217 + $0x30] sm:$0xff] %v383
        %392 = vst [vmem:[%s217 + $0x38] sm:$0xff] %v384
        %s393 = sand.u32 %s120, 1
        %s394 = scalar_lea.sflag [#allocation5], %s393
        %s395 = sand.u32 %s120, 1
        %s396 = smul.addr %s395, 64
        %s397 = scalar_lea.vmem [#allocation6], %s396
        // Predicated region
        $region41: #{norm_act.1} parent=35 // pred_check
          %p398 = pneg %p130
        $region42: #{norm_act.1} parent=35 // pred_check_branch
          %400 = sbr.rel (%p398) target = $region44
        $region43: #{norm_act.1} parent=35 // pred_region
          %s402 = ssub.s32 1024, 1024
          %403 = vsyncadd %s394, %s402
          %s404 = smul.addr %s23, 8
          %s405 = smul.addr %s404, 128
          %s406 = scalar_lea.hbm %s4, %s405
          %s407 = sshll.u32 %s397, 4
          %s408 = int_to_ptr.vmem [resolvable:$true] %s407
          %413 = dma.vmem_to_hbm [thread:$0]  %s408, 1024, %s406, %s394, 256, 256, 16
        $region44: #{norm_act.1} parent=35 // pred_fallthru
          _
      $region36: #{norm_act.1} parent=5 // pred_fallthru
        _
      %p414 = scmp.le.s32.totalorder 2, %s18
      // Predicated region
      $region45: #{norm_act.1} parent=5 // pred_check
        %p415 = pneg %p414
      $region46: #{norm_act.1} parent=5 // pred_check_branch
        %417 = sbr.rel (%p415) target = $region48
      $region47: #{norm_act.1} parent=5 // pred_region
        %s418 = ssub.s32 %s18, 2
        // Predicated region
        $region49: #{norm_act.1} parent=47 // pred_check
          %p419 = pneg %p136
        $region50: #{norm_act.1} parent=47 // pred_check_branch
          %421 = sbr.rel (%p419) target = $region52
        $region51: #{norm_act.1} parent=47 // pred_region
          %s422 = sand.u32 %s121, 1
          %s423 = scalar_lea.sflag [#allocation5], %s422
          %s424 = sand.u32 %s121, 1
          %s425 = smul.addr %s424, 64
          %s426 = scalar_lea.vmem [#allocation6], %s425
          %427 = dma.done %s423, 1024
        $region52: #{norm_act.1} parent=47 // pred_fallthru
          _
      $region48: #{norm_act.1} parent=5 // pred_fallthru
        _
    $region6: #{norm_act.1} parent=1 // loop_footer
      %s22 = sadd.s32 1, %s18
    $region7: #{norm_act.1} parent=1 // loop_footer_branch
      %17 = sbr.rel target = $region3
    $region8: #{norm_act.1} parent=1 // loop_exit
      _
    %428 = vsyncpa [#allocation4], 1
    %s429 = scalar_lea.sflag [#allocation4], 1
    %430 = vsyncpa %s429, 1
    %431 = vsyncpa [#allocation5], 1
    %s432 = scalar_lea.sflag [#allocation5], 1
    %433 = vsyncpa %s432, 1

</llo_original>
